<compile_context>
chip_gen: v6e
topology: v6e:2x2x1
jax: 0.10.0
libtpu: 0.0.40
codegen_flags: <defaults>
</compile_context>

<pallas_src>
import jax
import jax.numpy as jnp
from jax.experimental import pallas as pl
from jax.experimental.pallas import tpu as pltpu

LN_EPS = 1e-5  # PyTorch nn.LayerNorm default


def _round_up(x, m):
    return (x + m - 1) // m * m


def _layer_norm_onepass(x, gamma, beta):
    """Single-pass LN: var = E[x^2] - mu^2 (biased, matching torch)."""
    h = x.shape[-1]
    inv_h = 1.0 / h
    s = jnp.sum(x, axis=-1, keepdims=True)
    s2 = jnp.sum(x * x, axis=-1, keepdims=True)
    mu = s * inv_h
    var = jnp.maximum(s2 * inv_h - mu * mu, 0.0)
    return (x - mu) * jax.lax.rsqrt(var + LN_EPS) * gamma + beta


def hierarchical_fusion_kernel(
    text_ref, quad_ref, attn_ref,
    w1t_ref, w1q_ref, b1_ref, g1_ref, bt1_ref,
    w2l_ref, w2a_ref, b2_ref, g2_ref, bt2_ref,
    out_ref,
):
    # Activations -> bf16 for the MXU; accumulate in f32.
    t = text_ref[...].astype(jnp.bfloat16)
    q = quad_ref[...].astype(jnp.bfloat16)
    a = attn_ref[...].astype(jnp.bfloat16)

    # ---- level 1: Linear(2H -> H) on cat([text, quad]) (split-K matmul) ----
    y1 = (jnp.dot(t, w1t_ref[...], preferred_element_type=jnp.float32)
          + jnp.dot(q, w1q_ref[...], preferred_element_type=jnp.float32)
          + b1_ref[...])
    y1 = _layer_norm_onepass(y1, g1_ref[...], bt1_ref[...])
    y1 = jnp.maximum(y1, 0.0)              # ReLU; Dropout = identity (eval mode)

    # ---- level 2: Linear(2H -> 3H) on cat([level1, attn]) ----
    y2 = (jnp.dot(y1.astype(jnp.bfloat16), w2l_ref[...],
                  preferred_element_type=jnp.float32)
          + jnp.dot(a, w2a_ref[...], preferred_element_type=jnp.float32)
          + b2_ref[...])
    y2 = _layer_norm_onepass(y2, g2_ref[...], bt2_ref[...])
    out_ref[...] = jnp.maximum(y2, 0.0)    # ReLU; Dropout identity in eval.


def hierarchical_fusion(text, quad, attn, params, *, tm=512):
    B, S, H = text.shape
    N = B * S
    H3 = 3 * H

    # Row tile: multiple of 8 sublanes; small problems collapse to a single tile.
    TM = min(tm, _round_up(N, 8))
    N_pad = _round_up(N, TM)

    def prep(x):
        x = x.reshape(N, H).astype(jnp.float32)
        if N_pad != N:
            x = jnp.pad(x, ((0, N_pad - N), (0, 0)))
        return x

    t2, q2, a2 = prep(text), prep(quad), prep(attn)

    # Pre-split fused (2H, out) weights and cast to bf16 (zero-cost "concat").
    w1, w2 = params["w1"], params["w2"]
    w1t = w1[:H].astype(jnp.bfloat16)
    w1q = w1[H:].astype(jnp.bfloat16)
    w2l = w2[:H].astype(jnp.bfloat16)
    w2a = w2[H:].astype(jnp.bfloat16)

    grid = (N_pad // TM,)

    in_specs = [
        pl.BlockSpec((TM, H), lambda i: (i, 0)),     # text rows
        pl.BlockSpec((TM, H), lambda i: (i, 0)),     # quad rows
        pl.BlockSpec((TM, H), lambda i: (i, 0)),     # attn rows
        pl.BlockSpec((H, H), lambda i: (0, 0)),      # w1_text   (VMEM-resident)
        pl.BlockSpec((H, H), lambda i: (0, 0)),      # w1_quad
        pl.BlockSpec((1, H), lambda i: (0, 0)),      # b1
        pl.BlockSpec((1, H), lambda i: (0, 0)),      # ln1 gamma
        pl.BlockSpec((1, H), lambda i: (0, 0)),      # ln1 beta
        pl.BlockSpec((H, H3), lambda i: (0, 0)),     # w2_level1
        pl.BlockSpec((H, H3), lambda i: (0, 0)),     # w2_attn
        pl.BlockSpec((1, H3), lambda i: (0, 0)),     # b2
        pl.BlockSpec((1, H3), lambda i: (0, 0)),     # ln2 gamma
        pl.BlockSpec((1, H3), lambda i: (0, 0)),     # ln2 beta
    ]
    out_spec = pl.BlockSpec((TM, H3), lambda i: (i, 0))

    # Advisory cost estimate for the XLA scheduler.
    flops = 2 * N_pad * (2 * H) * (H + H3)
    bytes_accessed = (N_pad * (3 * H + H3)) * 4 + (8 * H * H) * 2 + (8 * H) * 4
    cost = pl.CostEstimate(flops=flops, transcendentals=2 * N_pad,
                           bytes_accessed=bytes_accessed)

    # VMEM budget: double-buffered activation tiles + resident bf16 weights.
    vmem_bytes = (2 * (3 * TM * H + TM * H3) * 4     # in/out tiles, 2 buffers
                  + 2 * 8 * H * H * 2                # bf16 weights (dbl-buffered)
                  + 2 * 8 * H * 4)                   # biases / LN params
    vmem_limit = min(64 << 20, max(32 << 20, 2 * vmem_bytes))

    out = pl.pallas_call(
        hierarchical_fusion_kernel,
        out_shape=jax.ShapeDtypeStruct((N_pad, H3), jnp.float32),
        grid=grid,
        in_specs=in_specs,
        out_specs=out_spec,
        compiler_params=pltpu.CompilerParams(
            dimension_semantics=("parallel",),
            vmem_limit_bytes=vmem_limit,
        ),
        cost_estimate=cost,
    )(t2, q2, a2,
      w1t, w1q, params["b1"], params["g1"], params["bt1"],
      w2l, w2a, params["b2"], params["g2"], params["bt2"])

    return out[:N].reshape(B, S, H3)


def init_params(key, hidden_size):
    H = hidden_size
    ks = jax.random.split(key, 8)
    scale1 = 1.0 / jnp.sqrt(2.0 * H)
    return {
        # Linear weights stored as (in_features, out_features) for x @ W.
        "w1": jax.random.uniform(ks[0], (2 * H, H), jnp.float32, -scale1, scale1),
        "b1": jax.random.uniform(ks[1], (1, H), jnp.float32, -scale1, scale1),
        "g1": jnp.ones((1, H), jnp.float32)
               + 0.01 * jax.random.normal(ks[2], (1, H), jnp.float32),
        "bt1": 0.01 * jax.random.normal(ks[3], (1, H), jnp.float32),
        "w2": jax.random.uniform(ks[4], (2 * H, 3 * H), jnp.float32, -scale1, scale1),
        "b2": jax.random.uniform(ks[5], (1, 3 * H), jnp.float32, -scale1, scale1),
        "g2": jnp.ones((1, 3 * H), jnp.float32)
               + 0.01 * jax.random.normal(ks[6], (1, 3 * H), jnp.float32),
        "bt2": 0.01 * jax.random.normal(ks[7], (1, 3 * H), jnp.float32),
    }


def _layer_norm_ref(x, gamma, beta):
    mu = jnp.mean(x, axis=-1, keepdims=True)
    var = jnp.mean((x - mu) ** 2, axis=-1, keepdims=True)  # biased, like torch
    return (x - mu) * jax.lax.rsqrt(var + LN_EPS) * gamma + beta


def reference(text, quad, attn, params):
    """Pure-JAX f32 reference matching the PyTorch forward (eval mode)."""
    x1 = jnp.concatenate([text, quad], axis=-1)
    y1 = x1 @ params["w1"] + params["b1"]
    y1 = _layer_norm_ref(y1, params["g1"], params["bt1"])
    y1 = jnp.maximum(y1, 0.0)
    x2 = jnp.concatenate([y1, attn], axis=-1)
    y2 = x2 @ params["w2"] + params["b2"]
    y2 = _layer_norm_ref(y2, params["g2"], params["bt2"])
    return jnp.maximum(y2, 0.0)


if __name__ == "__main__":
    B, S, H = 2, 8, 32
    key = jax.random.PRNGKey(0)
    k_t, k_q, k_a, k_p = jax.random.split(key, 4)

    text = jax.random.normal(k_t, (B, S, H), jnp.float32)
    quad = jax.random.normal(k_q, (B, S, H), jnp.float32)
    attn = jax.random.normal(k_a, (B, S, H), jnp.float32)
    params = init_params(k_p, H)

    out = hierarchical_fusion(text, quad, attn, params)
    out = jax.block_until_ready(out)

    ref = reference(text, quad, attn, params)
    assert out.shape == (B, S, 3 * H)
    # bf16 MXU matmuls (f32 accumulation) -> loosened tolerance vs f32 reference.
    assert jnp.allclose(out, ref, atol=3e-2, rtol=3e-2), "mismatch vs reference"

    print("KERNEL_OK")
</pallas_src>

<mosaic_0001>
module attributes {stable_mosaic.version = 11 : i64} {
  func.func @hierarchical_fusion_kernel(%arg0: i32, %arg1: memref<16x32xf32, #tpu.memory_space<vmem>>, %arg2: memref<16x32xf32, #tpu.memory_space<vmem>>, %arg3: memref<16x32xf32, #tpu.memory_space<vmem>>, %arg4: memref<32x32xbf16, #tpu.memory_space<vmem>>, %arg5: memref<32x32xbf16, #tpu.memory_space<vmem>>, %arg6: memref<1x32xf32, #tpu.memory_space<vmem>>, %arg7: memref<1x32xf32, #tpu.memory_space<vmem>>, %arg8: memref<1x32xf32, #tpu.memory_space<vmem>>, %arg9: memref<32x96xbf16, #tpu.memory_space<vmem>>, %arg10: memref<32x96xbf16, #tpu.memory_space<vmem>>, %arg11: memref<1x96xf32, #tpu.memory_space<vmem>>, %arg12: memref<1x96xf32, #tpu.memory_space<vmem>>, %arg13: memref<1x96xf32, #tpu.memory_space<vmem>>, %arg14: memref<16x96xf32, #tpu.memory_space<vmem>>) attributes {dimension_semantics = [#tpu.dimension_semantics<parallel>], iteration_bounds = array<i64: 1>, scalar_prefetch = 0 : i64, scratch_operands = 0 : i64, tpu.core_type = #tpu.core_type<tc>, window_params = [{transform_indices = @transform_0, window_bounds = array<i64: 16, 32>}, {transform_indices = @transform_1, window_bounds = array<i64: 16, 32>}, {transform_indices = @transform_2, window_bounds = array<i64: 16, 32>}, {pipeline_mode = #tpu.pipeline_mode<synchronous>, transform_indices = @transform_3, window_bounds = array<i64: 32, 32>}, {pipeline_mode = #tpu.pipeline_mode<synchronous>, transform_indices = @transform_4, window_bounds = array<i64: 32, 32>}, {pipeline_mode = #tpu.pipeline_mode<synchronous>, transform_indices = @transform_5, window_bounds = array<i64: 1, 32>}, {pipeline_mode = #tpu.pipeline_mode<synchronous>, transform_indices = @transform_6, window_bounds = array<i64: 1, 32>}, {pipeline_mode = #tpu.pipeline_mode<synchronous>, transform_indices = @transform_7, window_bounds = array<i64: 1, 32>}, {pipeline_mode = #tpu.pipeline_mode<synchronous>, transform_indices = @transform_8, window_bounds = array<i64: 32, 96>}, {pipeline_mode = #tpu.pipeline_mode<synchronous>, transform_indices = @transform_9, window_bounds = array<i64: 32, 96>}, {pipeline_mode = #tpu.pipeline_mode<synchronous>, transform_indices = @transform_10, window_bounds = array<i64: 1, 96>}, {pipeline_mode = #tpu.pipeline_mode<synchronous>, transform_indices = @transform_11, window_bounds = array<i64: 1, 96>}, {pipeline_mode = #tpu.pipeline_mode<synchronous>, transform_indices = @transform_12, window_bounds = array<i64: 1, 96>}, {transform_indices = @transform_13, window_bounds = array<i64: 16, 96>}]} {
    %c0 = arith.constant 0 : index
    %c0_0 = arith.constant 0 : index
    %0 = vector.load %arg1[%c0, %c0_0] : memref<16x32xf32, #tpu.memory_space<vmem>>, vector<16x32xf32>
    %1 = arith.truncf %0 : vector<16x32xf32> to vector<16x32xbf16>
    %c0_1 = arith.constant 0 : index
    %c0_2 = arith.constant 0 : index
    %2 = vector.load %arg2[%c0_1, %c0_2] : memref<16x32xf32, #tpu.memory_space<vmem>>, vector<16x32xf32>
    %3 = arith.truncf %2 : vector<16x32xf32> to vector<16x32xbf16>
    %c0_3 = arith.constant 0 : index
    %c0_4 = arith.constant 0 : index
    %4 = vector.load %arg3[%c0_3, %c0_4] : memref<16x32xf32, #tpu.memory_space<vmem>>, vector<16x32xf32>
    %5 = arith.truncf %4 : vector<16x32xf32> to vector<16x32xbf16>
    %c0_5 = arith.constant 0 : index
    %c0_6 = arith.constant 0 : index
    %6 = vector.load %arg4[%c0_5, %c0_6] : memref<32x32xbf16, #tpu.memory_space<vmem>>, vector<32x32xbf16>
    %cst = arith.constant dense<0.000000e+00> : vector<16x32xf32>
    %7 = tpu.matmul %1, %6, %cst {dimension_numbers = #tpu.dot_dimension_numbers<[1], [0], [0], [1], [0, 0, 1, 1], [], []>} : vector<16x32xbf16>, vector<32x32xbf16>, vector<16x32xf32> -> vector<16x32xf32>
    %c0_7 = arith.constant 0 : index
    %c0_8 = arith.constant 0 : index
    %8 = vector.load %arg5[%c0_7, %c0_8] : memref<32x32xbf16, #tpu.memory_space<vmem>>, vector<32x32xbf16>
    %cst_9 = arith.constant dense<0.000000e+00> : vector<16x32xf32>
    %9 = tpu.matmul %3, %8, %cst_9 {dimension_numbers = #tpu.dot_dimension_numbers<[1], [0], [0], [1], [0, 0, 1, 1], [], []>} : vector<16x32xbf16>, vector<32x32xbf16>, vector<16x32xf32> -> vector<16x32xf32>
    %10 = arith.addf %7, %9 : vector<16x32xf32>
    %c0_10 = arith.constant 0 : index
    %c0_11 = arith.constant 0 : index
    %11 = vector.load %arg6[%c0_10, %c0_11] : memref<1x32xf32, #tpu.memory_space<vmem>>, vector<1x32xf32>
    %12 = vector.broadcast %11 : vector<1x32xf32> to vector<16x32xf32>
    %13 = arith.addf %10, %12 : vector<16x32xf32>
    %c0_12 = arith.constant 0 : index
    %c0_13 = arith.constant 0 : index
    %14 = vector.load %arg7[%c0_12, %c0_13] : memref<1x32xf32, #tpu.memory_space<vmem>>, vector<1x32xf32>
    %c0_14 = arith.constant 0 : index
    %c0_15 = arith.constant 0 : index
    %15 = vector.load %arg8[%c0_14, %c0_15] : memref<1x32xf32, #tpu.memory_space<vmem>>, vector<1x32xf32>
    %cst_16 = arith.constant dense<0.000000e+00> : vector<16xf32>
    %16 = vector.multi_reduction <add>, %13, %cst_16 [1] : vector<16x32xf32> to vector<16xf32>
    %17 = vector.shape_cast %16 : vector<16xf32> to vector<16x1xf32>
    %18 = arith.mulf %13, %13 : vector<16x32xf32>
    %cst_17 = arith.constant dense<0.000000e+00> : vector<16xf32>
    %19 = vector.multi_reduction <add>, %18, %cst_17 [1] : vector<16x32xf32> to vector<16xf32>
    %20 = vector.shape_cast %19 : vector<16xf32> to vector<16x1xf32>
    %cst_18 = arith.constant 3.125000e-02 : f32
    %21 = vector.broadcast %cst_18 : f32 to vector<16x1xf32>
    %22 = arith.mulf %17, %21 : vector<16x1xf32>
    %cst_19 = arith.constant 3.125000e-02 : f32
    %23 = vector.broadcast %cst_19 : f32 to vector<16x1xf32>
    %24 = arith.mulf %20, %23 : vector<16x1xf32>
    %25 = arith.mulf %22, %22 : vector<16x1xf32>
    %26 = arith.subf %24, %25 : vector<16x1xf32>
    %cst_20 = arith.constant 0.000000e+00 : f32
    %27 = vector.broadcast %cst_20 : f32 to vector<16x1xf32>
    %28 = arith.maximumf %26, %27 : vector<16x1xf32>
    %29 = vector.broadcast %22 : vector<16x1xf32> to vector<16x32xf32>
    %30 = arith.subf %13, %29 : vector<16x32xf32>
    %cst_21 = arith.constant 9.99999974E-6 : f32
    %31 = vector.broadcast %cst_21 : f32 to vector<16x1xf32>
    %32 = arith.addf %28, %31 : vector<16x1xf32>
    %33 = math.rsqrt %32 : vector<16x1xf32>
    %34 = vector.broadcast %33 : vector<16x1xf32> to vector<16x32xf32>
    %35 = arith.mulf %30, %34 : vector<16x32xf32>
    %36 = vector.broadcast %14 : vector<1x32xf32> to vector<16x32xf32>
    %37 = arith.mulf %35, %36 : vector<16x32xf32>
    %38 = vector.broadcast %15 : vector<1x32xf32> to vector<16x32xf32>
    %39 = arith.addf %37, %38 : vector<16x32xf32>
    %cst_22 = arith.constant 0.000000e+00 : f32
    %40 = vector.broadcast %cst_22 : f32 to vector<16x32xf32>
    %41 = arith.maximumf %39, %40 : vector<16x32xf32>
    %42 = arith.truncf %41 : vector<16x32xf32> to vector<16x32xbf16>
    %c0_23 = arith.constant 0 : index
    %c0_24 = arith.constant 0 : index
    %43 = vector.load %arg9[%c0_23, %c0_24] : memref<32x96xbf16, #tpu.memory_space<vmem>>, vector<32x96xbf16>
    %cst_25 = arith.constant dense<0.000000e+00> : vector<16x96xf32>
    %44 = tpu.matmul %42, %43, %cst_25 {dimension_numbers = #tpu.dot_dimension_numbers<[1], [0], [0], [1], [0, 0, 1, 1], [], []>} : vector<16x32xbf16>, vector<32x96xbf16>, vector<16x96xf32> -> vector<16x96xf32>
    %c0_26 = arith.constant 0 : index
    %c0_27 = arith.constant 0 : index
    %45 = vector.load %arg10[%c0_26, %c0_27] : memref<32x96xbf16, #tpu.memory_space<vmem>>, vector<32x96xbf16>
    %cst_28 = arith.constant dense<0.000000e+00> : vector<16x96xf32>
    %46 = tpu.matmul %5, %45, %cst_28 {dimension_numbers = #tpu.dot_dimension_numbers<[1], [0], [0], [1], [0, 0, 1, 1], [], []>} : vector<16x32xbf16>, vector<32x96xbf16>, vector<16x96xf32> -> vector<16x96xf32>
    %47 = arith.addf %44, %46 : vector<16x96xf32>
    %c0_29 = arith.constant 0 : index
    %c0_30 = arith.constant 0 : index
    %48 = vector.load %arg11[%c0_29, %c0_30] : memref<1x96xf32, #tpu.memory_space<vmem>>, vector<1x96xf32>
    %49 = vector.broadcast %48 : vector<1x96xf32> to vector<16x96xf32>
    %50 = arith.addf %47, %49 : vector<16x96xf32>
    %c0_31 = arith.constant 0 : index
    %c0_32 = arith.constant 0 : index
    %51 = vector.load %arg12[%c0_31, %c0_32] : memref<1x96xf32, #tpu.memory_space<vmem>>, vector<1x96xf32>
    %c0_33 = arith.constant 0 : index
    %c0_34 = arith.constant 0 : index
    %52 = vector.load %arg13[%c0_33, %c0_34] : memref<1x96xf32, #tpu.memory_space<vmem>>, vector<1x96xf32>
    %cst_35 = arith.constant dense<0.000000e+00> : vector<16xf32>
    %53 = vector.multi_reduction <add>, %50, %cst_35 [1] : vector<16x96xf32> to vector<16xf32>
    %54 = vector.shape_cast %53 : vector<16xf32> to vector<16x1xf32>
    %55 = arith.mulf %50, %50 : vector<16x96xf32>
    %cst_36 = arith.constant dense<0.000000e+00> : vector<16xf32>
    %56 = vector.multi_reduction <add>, %55, %cst_36 [1] : vector<16x96xf32> to vector<16xf32>
    %57 = vector.shape_cast %56 : vector<16xf32> to vector<16x1xf32>
    %cst_37 = arith.constant 0.010416667 : f32
    %58 = vector.broadcast %cst_37 : f32 to vector<16x1xf32>
    %59 = arith.mulf %54, %58 : vector<16x1xf32>
    %cst_38 = arith.constant 0.010416667 : f32
    %60 = vector.broadcast %cst_38 : f32 to vector<16x1xf32>
    %61 = arith.mulf %57, %60 : vector<16x1xf32>
    %62 = arith.mulf %59, %59 : vector<16x1xf32>
    %63 = arith.subf %61, %62 : vector<16x1xf32>
    %cst_39 = arith.constant 0.000000e+00 : f32
    %64 = vector.broadcast %cst_39 : f32 to vector<16x1xf32>
    %65 = arith.maximumf %63, %64 : vector<16x1xf32>
    %66 = vector.broadcast %59 : vector<16x1xf32> to vector<16x96xf32>
    %67 = arith.subf %50, %66 : vector<16x96xf32>
    %cst_40 = arith.constant 9.99999974E-6 : f32
    %68 = vector.broadcast %cst_40 : f32 to vector<16x1xf32>
    %69 = arith.addf %65, %68 : vector<16x1xf32>
    %70 = math.rsqrt %69 : vector<16x1xf32>
    %71 = vector.broadcast %70 : vector<16x1xf32> to vector<16x96xf32>
    %72 = arith.mulf %67, %71 : vector<16x96xf32>
    %73 = vector.broadcast %51 : vector<1x96xf32> to vector<16x96xf32>
    %74 = arith.mulf %72, %73 : vector<16x96xf32>
    %75 = vector.broadcast %52 : vector<1x96xf32> to vector<16x96xf32>
    %76 = arith.addf %74, %75 : vector<16x96xf32>
    %cst_41 = arith.constant 0.000000e+00 : f32
    %77 = vector.broadcast %cst_41 : f32 to vector<16x96xf32>
    %78 = arith.maximumf %76, %77 : vector<16x96xf32>
    %c0_42 = arith.constant 0 : index
    %c0_43 = arith.constant 0 : index
    %79 = vector.load %arg14[%c0_42, %c0_43] : memref<16x96xf32, #tpu.memory_space<vmem>>, vector<16x96xf32>
    tpu.vector_store %arg14[%c0_42, %c0_43], %78 {strides = array<i32>} : memref<16x96xf32, #tpu.memory_space<vmem>>, vector<16x96xf32>,
    return
  }
  func.func @transform_0(%arg0: i32) -> (i32, i32) {
    %c0_i32 = arith.constant 0 : i32
    %c0_i32_0 = arith.constant 0 : i32
    return %arg0, %c0_i32 : i32, i32
  }
  func.func @transform_1(%arg0: i32) -> (i32, i32) {
    %c0_i32 = arith.constant 0 : i32
    %c0_i32_0 = arith.constant 0 : i32
    return %arg0, %c0_i32 : i32, i32
  }
  func.func @transform_2(%arg0: i32) -> (i32, i32) {
    %c0_i32 = arith.constant 0 : i32
    %c0_i32_0 = arith.constant 0 : i32
    return %arg0, %c0_i32 : i32, i32
  }
  func.func @transform_3(%arg0: i32) -> (i32, i32) {
    %c0_i32 = arith.constant 0 : i32
    %c0_i32_0 = arith.constant 0 : i32
    %c0_i32_1 = arith.constant 0 : i32
    return %c0_i32, %c0_i32_0 : i32, i32
  }
  func.func @transform_4(%arg0: i32) -> (i32, i32) {
    %c0_i32 = arith.constant 0 : i32
    %c0_i32_0 = arith.constant 0 : i32
    %c0_i32_1 = arith.constant 0 : i32
    return %c0_i32, %c0_i32_0 : i32, i32
  }
  func.func @transform_5(%arg0: i32) -> (i32, i32) {
    %c0_i32 = arith.constant 0 : i32
    %c0_i32_0 = arith.constant 0 : i32
    %c0_i32_1 = arith.constant 0 : i32
    return %c0_i32, %c0_i32_0 : i32, i32
  }
  func.func @transform_6(%arg0: i32) -> (i32, i32) {
    %c0_i32 = arith.constant 0 : i32
    %c0_i32_0 = arith.constant 0 : i32
    %c0_i32_1 = arith.constant 0 : i32
    return %c0_i32, %c0_i32_0 : i32, i32
  }
  func.func @transform_7(%arg0: i32) -> (i32, i32) {
    %c0_i32 = arith.constant 0 : i32
    %c0_i32_0 = arith.constant 0 : i32
    %c0_i32_1 = arith.constant 0 : i32
    return %c0_i32, %c0_i32_0 : i32, i32
  }
  func.func @transform_8(%arg0: i32) -> (i32, i32) {
    %c0_i32 = arith.constant 0 : i32
    %c0_i32_0 = arith.constant 0 : i32
    %c0_i32_1 = arith.constant 0 : i32
    return %c0_i32, %c0_i32_0 : i32, i32
  }
  func.func @transform_9(%arg0: i32) -> (i32, i32) {
    %c0_i32 = arith.constant 0 : i32
    %c0_i32_0 = arith.constant 0 : i32
    %c0_i32_1 = arith.constant 0 : i32
    return %c0_i32, %c0_i32_0 : i32, i32
  }
  func.func @transform_10(%arg0: i32) -> (i32, i32) {
    %c0_i32 = arith.constant 0 : i32
    %c0_i32_0 = arith.constant 0 : i32
    %c0_i32_1 = arith.constant 0 : i32
    return %c0_i32, %c0_i32_0 : i32, i32
  }
  func.func @transform_11(%arg0: i32) -> (i32, i32) {
    %c0_i32 = arith.constant 0 : i32
    %c0_i32_0 = arith.constant 0 : i32
    %c0_i32_1 = arith.constant 0 : i32
    return %c0_i32, %c0_i32_0 : i32, i32
  }
  func.func @transform_12(%arg0: i32) -> (i32, i32) {
    %c0_i32 = arith.constant 0 : i32
    %c0_i32_0 = arith.constant 0 : i32
    %c0_i32_1 = arith.constant 0 : i32
    return %c0_i32, %c0_i32_0 : i32, i32
  }
  func.func @transform_13(%arg0: i32) -> (i32, i32) {
    %c0_i32 = arith.constant 0 : i32
    %c0_i32_0 = arith.constant 0 : i32
    return %arg0, %c0_i32 : i32, i32
  }
}

</mosaic_0001>

<llo_original>
// kernel: tpu_custom_call.1
$region0: #{tpu_custom_call.1}
  #allocation0 [shape = 'u32[]', space=smem, size = 0x4, offset = 0x4, fixed_abs, tag = 'smem constant byte address 0x4 - core index']
  #allocation1 [shape = 'u32[144,128]{1,0:T(1,128)}', space=vmem, size = 0x12000, scoped, tag = 'internal scratch']
  %s0 = inlined_call_operand.hbm [shape: f32[16,32], index: 0, kind: input, shape index: {}]
  %s1 = inlined_call_operand.hbm [shape: f32[16,32], index: 1, kind: input, shape index: {}]
  %s2 = inlined_call_operand.hbm [shape: f32[16,32], index: 2, kind: input, shape index: {}]
  %s3 = inlined_call_operand.hbm [shape: bf16[32,32], index: 3, kind: input, shape index: {}]
  %s4 = inlined_call_operand.hbm [shape: bf16[32,32], index: 4, kind: input, shape index: {}]
  %s5 = inlined_call_operand.hbm [shape: f32[1,32], index: 5, kind: input, shape index: {}]
  %s6 = inlined_call_operand.hbm [shape: f32[1,32], index: 6, kind: input, shape index: {}]
  %s7 = inlined_call_operand.hbm [shape: f32[1,32], index: 7, kind: input, shape index: {}]
  %s8 = inlined_call_operand.hbm [shape: bf16[32,96], index: 8, kind: input, shape index: {}]
  %s9 = inlined_call_operand.vmem [shape: bf16[32,96], index: 9, kind: input, shape index: {}]
  %s10 = inlined_call_operand.vmem [shape: f32[1,96], index: 10, kind: input, shape index: {}]
  %s11 = inlined_call_operand.vmem [shape: f32[1,96], index: 11, kind: input, shape index: {}]
  %s12 = inlined_call_operand.vmem [shape: f32[1,96], index: 12, kind: input, shape index: {}]
  %s13 = inlined_call_operand.hbm [shape: f32[16,96], index: 13, kind: output, shape index: {}]
  %s14 = sld [smem:[#allocation0]]
  $region98: #{tpu_custom_call.1} parent=0
    _
  %s16 = ssub.s32 1, %s14
  %s17 = scalar_select 0, %s16, %s14
  $region1: #{tpu_custom_call.1} parent=0
    #allocation2 [shape = 'u8[8192]{0}', space=vmem, size = 0x2000, scoped, tag = 'input window, operand 0, single buffered']
    #allocation3 [shape = 's32[1]{0}', space=sflag, size = 0x4, scoped, tag = 'scoped memory for tpu_custom_call.1']
    #allocation4 [shape = 's32[1]{0}', space=sflag, size = 0x4, scoped, tag = 'scoped memory for tpu_custom_call.1']
    #allocation5 [shape = 'u8[8192]{0}', space=vmem, size = 0x2000, scoped, tag = 'input window, operand 1, single buffered']
    #allocation6 [shape = 's32[1]{0}', space=sflag, size = 0x4, scoped, tag = 'scoped memory for tpu_custom_call.1']
    #allocation7 [shape = 'u8[8192]{0}', space=vmem, size = 0x2000, scoped, tag = 'input window, operand 2, single buffered']
    #allocation8 [shape = 'u8[8192]{0}', space=vmem, size = 0x2000, scoped, tag = 'input window, operand 3, single buffered']
    #allocation9 [shape = 's32[1]{0}', space=sflag, size = 0x4, scoped, tag = 'scoped memory for tpu_custom_call.1']
    #allocation10 [shape = 'u8[8192]{0}', space=vmem, size = 0x2000, scoped, tag = 'input window, operand 4, single buffered']
    #allocation11 [shape = 'u8[512]{0}', space=vmem, size = 0x400, scoped, tag = 'input window, operand 5, single buffered']
    #allocation12 [shape = 's32[1]{0}', space=sflag, size = 0x4, scoped, tag = 'scoped memory for tpu_custom_call.1']
    #allocation13 [shape = 'u8[512]{0}', space=vmem, size = 0x400, scoped, tag = 'input window, operand 6, single buffered']
    #allocation14 [shape = 'u8[512]{0}', space=vmem, size = 0x400, scoped, tag = 'input window, operand 7, single buffered']
    #allocation15 [shape = 's32[1]{0}', space=sflag, size = 0x4, scoped, tag = 'scoped memory for tpu_custom_call.1']
    #allocation16 [shape = 'u8[8192]{0}', space=vmem, size = 0x2000, scoped, tag = 'input window, operand 8, single buffered']
    #allocation17 [shape = 'u8[8192]{0}', space=vmem, size = 0x2000, scoped, tag = 'output window, operand 0, single buffered']
    %18 = vsyncpa [#allocation3], 0
    %19 = vsyncpa [#allocation6], 0
    %20 = vsyncpa [#allocation9], 0
    %21 = vsyncpa [#allocation12], 0
    %22 = vsyncpa [#allocation15], 0
    %23 = vsyncpa [#allocation4], 0
    // Predicated region
    $region2: #{tpu_custom_call.1} parent=1 // pred_check
      _
    $region3: #{tpu_custom_call.1} parent=1 // pred_check_branch
      %25 = sbr.rel (0) target = $region5
    $region4: #{tpu_custom_call.1} parent=1 // pred_region
      %s27 = ssub.s32 256, 256
      %28 = vsyncadd [#allocation3], %s27
      %s29 = sshll.u32 [#allocation2], 4
      %s30 = int_to_ptr.vmem [resolvable:$true] %s29
      %35 = dma.hbm_to_vmem [thread:$0]  %s0, 256, %s30, [#allocation3], 128, 128, 8
    $region5: #{tpu_custom_call.1} parent=1 // pred_fallthru
      _
    // Predicated region
    $region6: #{tpu_custom_call.1} parent=1 // pred_check
      _
    $region7: #{tpu_custom_call.1} parent=1 // pred_check_branch
      %37 = sbr.rel (0) target = $region9
    $region8: #{tpu_custom_call.1} parent=1 // pred_region
      %s39 = ssub.s32 256, 256
      %40 = vsyncadd [#allocation6], %s39
      %s41 = sshll.u32 [#allocation5], 4
      %s42 = int_to_ptr.vmem [resolvable:$true] %s41
      %47 = dma.hbm_to_vmem [thread:$0]  %s1, 256, %s42, [#allocation6], 128, 128, 8
    $region9: #{tpu_custom_call.1} parent=1 // pred_fallthru
      _
    // Predicated region
    $region10: #{tpu_custom_call.1} parent=1 // pred_check
      _
    $region11: #{tpu_custom_call.1} parent=1 // pred_check_branch
      %49 = sbr.rel (0) target = $region13
    $region12: #{tpu_custom_call.1} parent=1 // pred_region
      %s51 = ssub.s32 256, 256
      %52 = vsyncadd [#allocation6], %s51
      %s53 = sshll.u32 [#allocation7], 4
      %s54 = int_to_ptr.vmem [resolvable:$true] %s53
      %59 = dma.hbm_to_vmem [thread:$0]  %s2, 256, %s54, [#allocation6], 128, 128, 8
    $region13: #{tpu_custom_call.1} parent=1 // pred_fallthru
      _
    // Predicated region
    $region14: #{tpu_custom_call.1} parent=1 // pred_check
      _
    $region15: #{tpu_custom_call.1} parent=1 // pred_check_branch
      %61 = sbr.rel (0) target = $region17
    $region16: #{tpu_custom_call.1} parent=1 // pred_region
      %s63 = ssub.s32 256, 256
      %64 = vsyncadd [#allocation9], %s63
      %s65 = sshll.u32 [#allocation8], 4
      %s66 = int_to_ptr.vmem [resolvable:$true] %s65
      %71 = dma.hbm_to_vmem [thread:$0]  %s3, 256, %s66, [#allocation9], 64, 64, 4
    $region17: #{tpu_custom_call.1} parent=1 // pred_fallthru
      _
    // Predicated region
    $region18: #{tpu_custom_call.1} parent=1 // pred_check
      _
    $region19: #{tpu_custom_call.1} parent=1 // pred_check_branch
      %73 = sbr.rel (0) target = $region21
    $region20: #{tpu_custom_call.1} parent=1 // pred_region
      %s75 = ssub.s32 256, 256
      %76 = vsyncadd [#allocation9], %s75
      %s77 = sshll.u32 [#allocation10], 4
      %s78 = int_to_ptr.vmem [resolvable:$true] %s77
      %83 = dma.hbm_to_vmem [thread:$0]  %s4, 256, %s78, [#allocation9], 64, 64, 4
    $region21: #{tpu_custom_call.1} parent=1 // pred_fallthru
      _
    // Predicated region
    $region22: #{tpu_custom_call.1} parent=1 // pred_check
      _
    $region23: #{tpu_custom_call.1} parent=1 // pred_check_branch
      %85 = sbr.rel (0) target = $region25
    $region24: #{tpu_custom_call.1} parent=1 // pred_region
      %s87 = ssub.s32 16, 16
      %88 = vsyncadd [#allocation12], %s87
      %s90 = sshll.u32 [#allocation11], 4
      %s91 = int_to_ptr.vmem [resolvable:$true] %s90
      %93 = dma.hbm_to_vmem [thread:$0]  %s5, 16, %s91, [#allocation12]
    $region25: #{tpu_custom_call.1} parent=1 // pred_fallthru
      _
    // Predicated region
    $region26: #{tpu_custom_call.1} parent=1 // pred_check
      _
    $region27: #{tpu_custom_call.1} parent=1 // pred_check_branch
      %95 = sbr.rel (0) target = $region29
    $region28: #{tpu_custom_call.1} parent=1 // pred_region
      %s97 = ssub.s32 16, 16
      %98 = vsyncadd [#allocation12], %s97
      %s100 = sshll.u32 [#allocation13], 4
      %s101 = int_to_ptr.vmem [resolvable:$true] %s100
      %103 = dma.hbm_to_vmem [thread:$0]  %s6, 16, %s101, [#allocation12]
    $region29: #{tpu_custom_call.1} parent=1 // pred_fallthru
      _
    // Predicated region
    $region30: #{tpu_custom_call.1} parent=1 // pred_check
      _
    $region31: #{tpu_custom_call.1} parent=1 // pred_check_branch
      %105 = sbr.rel (0) target = $region33
    $region32: #{tpu_custom_call.1} parent=1 // pred_region
      %s107 = ssub.s32 16, 16
      %108 = vsyncadd [#allocation15], %s107
      %s110 = sshll.u32 [#allocation14], 4
      %s111 = int_to_ptr.vmem [resolvable:$true] %s110
      %113 = dma.hbm_to_vmem [thread:$0]  %s7, 16, %s111, [#allocation15]
    $region33: #{tpu_custom_call.1} parent=1 // pred_fallthru
      _
    // Predicated region
    $region34: #{tpu_custom_call.1} parent=1 // pred_check
      _
    $region35: #{tpu_custom_call.1} parent=1 // pred_check_branch
      %115 = sbr.rel (0) target = $region37
    $region36: #{tpu_custom_call.1} parent=1 // pred_region
      %s117 = ssub.s32 256, 256
      %118 = vsyncadd [#allocation15], %s117
      %s119 = sshll.u32 [#allocation16], 4
      %s120 = int_to_ptr.vmem [resolvable:$true] %s119
      %125 = dma.hbm_to_vmem [thread:$0]  %s8, 256, %s120, [#allocation15], 64, 64, 4
    $region37: #{tpu_custom_call.1} parent=1 // pred_fallthru
      _
    // Predicated region
    $region38: #{tpu_custom_call.1} parent=1 // pred_check
      _
    $region39: #{tpu_custom_call.1} parent=1 // pred_check_branch
      %127 = sbr.rel (0) target = $region41
    $region40: #{tpu_custom_call.1} parent=1 // pred_region
      _
    $region41: #{tpu_custom_call.1} parent=1 // pred_fallthru
      _
    // Predicated region
    $region42: #{tpu_custom_call.1} parent=1 // pred_check
      _
    $region43: #{tpu_custom_call.1} parent=1 // pred_check_branch
      %129 = sbr.rel (0) target = $region45
    $region44: #{tpu_custom_call.1} parent=1 // pred_region
      _
    $region45: #{tpu_custom_call.1} parent=1 // pred_fallthru
      _
    // Predicated region
    $region46: #{tpu_custom_call.1} parent=1 // pred_check
      _
    $region47: #{tpu_custom_call.1} parent=1 // pred_check_branch
      %131 = sbr.rel (0) target = $region49
    $region48: #{tpu_custom_call.1} parent=1 // pred_region
      _
    $region49: #{tpu_custom_call.1} parent=1 // pred_fallthru
      _
    // Predicated region
    $region50: #{tpu_custom_call.1} parent=1 // pred_check
      _
    $region51: #{tpu_custom_call.1} parent=1 // pred_check_branch
      %133 = sbr.rel (0) target = $region53
    $region52: #{tpu_custom_call.1} parent=1 // pred_region
      _
    $region53: #{tpu_custom_call.1} parent=1 // pred_fallthru
      _
    // Predicated region
    $region54: #{tpu_custom_call.1} parent=1 // pred_check
      _
    $region55: #{tpu_custom_call.1} parent=1 // pred_check_branch
      %135 = sbr.rel (0) target = $region57
    $region56: #{tpu_custom_call.1} parent=1 // pred_region
      %136 = dma.done [#allocation3], 256
    $region57: #{tpu_custom_call.1} parent=1 // pred_fallthru
      _
    // Predicated region
    $region58: #{tpu_custom_call.1} parent=1 // pred_check
      _
    $region59: #{tpu_custom_call.1} parent=1 // pred_check_branch
      %138 = sbr.rel (0) target = $region61
    $region60: #{tpu_custom_call.1} parent=1 // pred_region
      %139 = dma.done [#allocation6], 256
    $region61: #{tpu_custom_call.1} parent=1 // pred_fallthru
      _
    // Predicated region
    $region62: #{tpu_custom_call.1} parent=1 // pred_check
      _
    $region63: #{tpu_custom_call.1} parent=1 // pred_check_branch
      %141 = sbr.rel (0) target = $region65
    $region64: #{tpu_custom_call.1} parent=1 // pred_region
      %142 = dma.done [#allocation6], 256
    $region65: #{tpu_custom_call.1} parent=1 // pred_fallthru
      _
    // Predicated region
    $region66: #{tpu_custom_call.1} parent=1 // pred_check
      _
    $region67: #{tpu_custom_call.1} parent=1 // pred_check_branch
      %144 = sbr.rel (0) target = $region69
    $region68: #{tpu_custom_call.1} parent=1 // pred_region
      %145 = dma.done [#allocation9], 256
    $region69: #{tpu_custom_call.1} parent=1 // pred_fallthru
      _
    // Predicated region
    $region70: #{tpu_custom_call.1} parent=1 // pred_check
      _
    $region71: #{tpu_custom_call.1} parent=1 // pred_check_branch
      %147 = sbr.rel (0) target = $region73
    $region72: #{tpu_custom_call.1} parent=1 // pred_region
      %148 = dma.done [#allocation9], 256
    $region73: #{tpu_custom_call.1} parent=1 // pred_fallthru
      _
    // Predicated region
    $region74: #{tpu_custom_call.1} parent=1 // pred_check
      _
    $region75: #{tpu_custom_call.1} parent=1 // pred_check_branch
      %150 = sbr.rel (0) target = $region77
    $region76: #{tpu_custom_call.1} parent=1 // pred_region
      %151 = dma.done [#allocation12], 16
    $region77: #{tpu_custom_call.1} parent=1 // pred_fallthru
      _
    // Predicated region
    $region78: #{tpu_custom_call.1} parent=1 // pred_check
      _
    $region79: #{tpu_custom_call.1} parent=1 // pred_check_branch
      %153 = sbr.rel (0) target = $region81
    $region80: #{tpu_custom_call.1} parent=1 // pred_region
      %154 = dma.done [#allocation12], 16
    $region81: #{tpu_custom_call.1} parent=1 // pred_fallthru
      _
    // Predicated region
    $region82: #{tpu_custom_call.1} parent=1 // pred_check
      _
    $region83: #{tpu_custom_call.1} parent=1 // pred_check_branch
      %156 = sbr.rel (0) target = $region85
    $region84: #{tpu_custom_call.1} parent=1 // pred_region
      %157 = dma.done [#allocation15], 16
    $region85: #{tpu_custom_call.1} parent=1 // pred_fallthru
      _
    // Predicated region
    $region86: #{tpu_custom_call.1} parent=1 // pred_check
      _
    $region87: #{tpu_custom_call.1} parent=1 // pred_check_branch
      %159 = sbr.rel (0) target = $region89
    $region88: #{tpu_custom_call.1} parent=1 // pred_region
      %160 = dma.done [#allocation15], 256
    $region89: #{tpu_custom_call.1} parent=1 // pred_fallthru
      _
    %v162 = vld [vmem:[#allocation2] sm:$0xff]
    %v163 = vld [vmem:[#allocation2 + $0x8] sm:$0xff]
    %v164 = vpack.c.bf16 %v163, %v162
    %v165 = vld [vmem:[#allocation5] sm:$0xff]
    %v166 = vld [vmem:[#allocation5 + $0x8] sm:$0xff]
    %v167 = vpack.c.bf16 %v166, %v165
    %v168 = vld [vmem:[#allocation7] sm:$0xff]
    %v169 = vld [vmem:[#allocation7 + $0x8] sm:$0xff]
    %v170 = vpack.c.bf16 %v169, %v168
    %v171 = vld [vmem:[#allocation8] sm:$0xf]
    %v172 = vld [vmem:[#allocation8 + $0x4] sm:$0xf]
    %v173 = vld [vmem:[#allocation8 + $0x8] sm:$0xf]
    %v174 = vld [vmem:[#allocation8 + $0xc] sm:$0xf]
    %v175 = vld [vmem:[#allocation10] sm:$0xf]
    %v176 = vld [vmem:[#allocation10 + $0x4] sm:$0xf]
    %v177 = vld [vmem:[#allocation10 + $0x8] sm:$0xf]
    %v178 = vld [vmem:[#allocation10 + $0xc] sm:$0xf]
    %v183 = vunpack.c.l.b16 %v175
    %v184 = vunpack.c.l.b16 %v176
    %v185 = vunpack.c.l.b16 %v177
    %v186 = vunpack.c.l.b16 %v178
    %v187 = vpack.c.b16 %v184, %v183
    %v188 = vpack.c.b16 %v186, %v185
    %vm191 = vcmask 261120
    %v193 = vsel %vm191, %v167, 0
    %195 = vmatprep.subr.bf16.mxu0 0
    %196 = vmatpush1.bf16.msra.mxu0 0
    %197 = vmatprep.subr.bf16.mxu0 0
    %198 = vmatpush1.bf16.msra.mxu0 0
    %199 = vmatprep.subr.bf16.mxu0 0
    %200 = vmatpush1.bf16.msra.mxu0 0
    %201 = vmatprep.subr.bf16.mxu0 0
    %202 = vmatpush1.bf16.msra.mxu0 0
    %203 = vmatprep.subr.bf16.mxu0 0
    %204 = vmatpush1.bf16.msra.mxu0 0
    %205 = vmatprep.subr.bf16.mxu0 0
    %206 = vmatpush1.bf16.msra.mxu0 0
    %207 = vmatprep.subr.bf16.mxu0 0
    %208 = vmatpush1.bf16.msra.mxu0 %v188
    %209 = vmatprep.subr.bf16.mxu0 0
    %210 = vmatpush1.bf16.msra.mxu0 %v187
    %211 = vmatprep.subr.bf16.mxu0 0
    %212 = vmatpush2.bf16.msra.mxu0 0
    %213 = vmatprep.subr.bf16.mxu0 0
    %214 = vmatpush2.bf16.msra.mxu0 0
    %215 = vmatprep.subr.bf16.mxu0 0
    %216 = vmatpush2.bf16.msra.mxu0 0
    %217 = vmatprep.subr.bf16.mxu0 0
    %218 = vmatpush2.bf16.msra.mxu0 0
    %219 = vmatprep.subr.bf16.mxu0 0
    %220 = vmatpush2.bf16.msra.mxu0 0
    %221 = vmatprep.subr.bf16.mxu0 0
    %222 = vmatpush2.bf16.msra.mxu0 0
    %223 = vmatprep.subr.bf16.mxu0 0
    %224 = vmatpush2.bf16.msra.mxu0 0
    %225 = vmatprep.subr.bf16.mxu0 0
    %226 = vmatpush2.bf16.msra.mxu0 0
    %227 = vmatprep.mubr.bf16.mxu0 0
    %228 = vmatmul.mubr.bf16.gmra.mxu0 %v193
    %v229 = vpop.f32.mrf.mxu0
    %v230 = vadd.f32 0.0, %v229
    %v231 = vpop.f32.mrf.mxu0
    %v232 = vpop.f32.mrf.mxu0
    %v233 = vadd.f32 0.0, %v232
    %v234 = vpop.f32.mrf.mxu0
    %235 = vdwg.mxu0
    %v240 = vunpack.c.l.b16 %v171
    %v241 = vunpack.c.l.b16 %v172
    %v242 = vunpack.c.l.b16 %v173
    %v243 = vunpack.c.l.b16 %v174
    %v244 = vpack.c.b16 %v241, %v240
    %v245 = vpack.c.b16 %v243, %v242
    %v249 = vsel %vm191, %v164, 0
    %251 = vmatprep.subr.bf16.mxu0 0
    %252 = vmatpush1.bf16.msra.mxu0 0
    %253 = vmatprep.subr.bf16.mxu0 0
    %254 = vmatpush1.bf16.msra.mxu0 0
    %255 = vmatprep.subr.bf16.mxu0 0
    %256 = vmatpush1.bf16.msra.mxu0 0
    %257 = vmatprep.subr.bf16.mxu0 0
    %258 = vmatpush1.bf16.msra.mxu0 0
    %259 = vmatprep.subr.bf16.mxu0 0
    %260 = vmatpush1.bf16.msra.mxu0 0
    %261 = vmatprep.subr.bf16.mxu0 0
    %262 = vmatpush1.bf16.msra.mxu0 0
    %263 = vmatprep.subr.bf16.mxu0 0
    %264 = vmatpush1.bf16.msra.mxu0 %v245
    %265 = vmatprep.subr.bf16.mxu0 0
    %266 = vmatpush1.bf16.msra.mxu0 %v244
    %267 = vmatprep.subr.bf16.mxu0 0
    %268 = vmatpush2.bf16.msra.mxu0 0
    %269 = vmatprep.subr.bf16.mxu0 0
    %270 = vmatpush2.bf16.msra.mxu0 0
    %271 = vmatprep.subr.bf16.mxu0 0
    %272 = vmatpush2.bf16.msra.mxu0 0
    %273 = vmatprep.subr.bf16.mxu0 0
    %274 = vmatpush2.bf16.msra.mxu0 0
    %275 = vmatprep.subr.bf16.mxu0 0
    %276 = vmatpush2.bf16.msra.mxu0 0
    %277 = vmatprep.subr.bf16.mxu0 0
    %278 = vmatpush2.bf16.msra.mxu0 0
    %279 = vmatprep.subr.bf16.mxu0 0
    %280 = vmatpush2.bf16.msra.mxu0 0
    %281 = vmatprep.subr.bf16.mxu0 0
    %282 = vmatpush2.bf16.msra.mxu0 0
    %283 = vmatprep.mubr.bf16.mxu0 0
    %284 = vmatmul.mubr.bf16.gmra.mxu0 %v249
    %v285 = vpop.f32.mrf.mxu0
    %v286 = vadd.f32 %v230, %v285
    %v287 = vpop.f32.mrf.mxu0
    %v288 = vpop.f32.mrf.mxu0
    %v289 = vadd.f32 %v233, %v288
    %v290 = vpop.f32.mrf.mxu0
    %291 = vdwg.mxu0
    %v292 = vld [vmem:[#allocation11] sm:$0x1]
    %v294 = vlaneseq
    %v295 = vshrl.u32 %v294, 7
    %v296 = vsub.s32 0, %v295
    %v297 = vrot.slane %v292, %v296
    %v299 = vadd.f32 %v286, %v297
    %v300 = vadd.f32 %v289, %v297
    %v301 = vld [vmem:[#allocation13] sm:$0x1]
    %v302 = vld [vmem:[#allocation14] sm:$0x1]
    %v303 = vsel %vm191, %v299, 0.0
    %304 = vadd.xlane.f32.xlu0 %v303
    %v305 = vpop.xlane.xlu0 %304
    %v306 = vsel %vm191, %v300, 0.0
    %307 = vadd.xlane.f32.xlu0 %v306
    %v308 = vpop.xlane.xlu0 %307
    %v309 = vmul.f32 %v299, %v299
    %v310 = vmul.f32 %v300, %v300
    %v311 = vsel %vm191, %v309, 0.0
    %312 = vadd.xlane.f32.xlu0 %v311
    %v313 = vpop.xlane.xlu0 %312
    %v314 = vsel %vm191, %v310, 0.0
    %315 = vadd.xlane.f32.xlu0 %v314
    %v316 = vpop.xlane.xlu0 %315
    %v317 = vmul.f32 %v305, 0.03125
    %v318 = vmul.f32 %v308, 0.03125
    %v319 = vmul.f32 %v313, 0.03125
    %v320 = vmul.f32 %v316, 0.03125
    %v321 = vmul.f32 %v317, %v317
    %v322 = vmul.f32 %v318, %v318
    %v323 = vsub.f32 %v319, %v321
    %v324 = vsub.f32 %v320, %v322
    %v325 = vmax.f32 %v323, 0.0
    %v326 = vmax.f32 %v324, 0.0
    %v327 = vsub.f32 %v299, %v317
    %v328 = vsub.f32 %v300, %v318
    %v329 = vadd.f32 %v325, 1e-05
    %v330 = vadd.f32 %v326, 1e-05
    %v331 = vrsqrt.pop %v329
    %v332 = vrsqrt.pop %v330
    %v333 = vmul.f32 %v327, %v331
    %v334 = vmul.f32 %v328, %v332
    %v336 = vlaneseq
    %v337 = vshrl.u32 %v336, 7
    %v338 = vsub.s32 0, %v337
    %v339 = vrot.slane %v301, %v338
    %v341 = vmul.f32 %v333, %v339
    %v342 = vmul.f32 %v334, %v339
    %v344 = vlaneseq
    %v345 = vshrl.u32 %v344, 7
    %v346 = vsub.s32 0, %v345
    %v347 = vrot.slane %v302, %v346
    %v349 = vadd.f32 %v341, %v347
    %v350 = vadd.f32 %v342, %v347
    %v351 = vmax.f32 %v349, 0.0
    %v352 = vmax.f32 %v350, 0.0
    %v353 = vpack.c.bf16 %v352, %v351
    %v354 = vld [vmem:[#allocation16] sm:$0xf]
    %v355 = vld [vmem:[#allocation16 + $0x4] sm:$0xf]
    %v356 = vld [vmem:[#allocation16 + $0x8] sm:$0xf]
    %v357 = vld [vmem:[#allocation16 + $0xc] sm:$0xf]
    %v358 = vld [vmem:[%s9] sm:$0xf]
    %v359 = vld [vmem:[%s9 + $0x4] sm:$0xf]
    %v360 = vld [vmem:[%s9 + $0x8] sm:$0xf]
    %v361 = vld [vmem:[%s9 + $0xc] sm:$0xf]
    %v366 = vunpack.c.l.b16 %v358
    %v367 = vunpack.c.l.b16 %v359
    %v368 = vunpack.c.l.b16 %v360
    %v369 = vunpack.c.l.b16 %v361
    %v370 = vpack.c.b16 %v367, %v366
    %v371 = vpack.c.b16 %v369, %v368
    %v375 = vsel %vm191, %v170, 0
    %377 = vmatprep.subr.bf16.mxu0 0
    %378 = vmatpush1.bf16.msra.mxu0 0
    %379 = vmatprep.subr.bf16.mxu0 0
    %380 = vmatpush1.bf16.msra.mxu0 0
    %381 = vmatprep.subr.bf16.mxu0 0
    %382 = vmatpush1.bf16.msra.mxu0 0
    %383 = vmatprep.subr.bf16.mxu0 0
    %384 = vmatpush1.bf16.msra.mxu0 0
    %385 = vmatprep.subr.bf16.mxu0 0
    %386 = vmatpush1.bf16.msra.mxu0 0
    %387 = vmatprep.subr.bf16.mxu0 0
    %388 = vmatpush1.bf16.msra.mxu0 0
    %389 = vmatprep.subr.bf16.mxu0 0
    %390 = vmatpush1.bf16.msra.mxu0 %v371
    %391 = vmatprep.subr.bf16.mxu0 0
    %392 = vmatpush1.bf16.msra.mxu0 %v370
    %393 = vmatprep.subr.bf16.mxu0 0
    %394 = vmatpush2.bf16.msra.mxu0 0
    %395 = vmatprep.subr.bf16.mxu0 0
    %396 = vmatpush2.bf16.msra.mxu0 0
    %397 = vmatprep.subr.bf16.mxu0 0
    %398 = vmatpush2.bf16.msra.mxu0 0
    %399 = vmatprep.subr.bf16.mxu0 0
    %400 = vmatpush2.bf16.msra.mxu0 0
    %401 = vmatprep.subr.bf16.mxu0 0
    %402 = vmatpush2.bf16.msra.mxu0 0
    %403 = vmatprep.subr.bf16.mxu0 0
    %404 = vmatpush2.bf16.msra.mxu0 0
    %405 = vmatprep.subr.bf16.mxu0 0
    %406 = vmatpush2.bf16.msra.mxu0 0
    %407 = vmatprep.subr.bf16.mxu0 0
    %408 = vmatpush2.bf16.msra.mxu0 0
    %409 = vmatprep.mubr.bf16.mxu0 0
    %410 = vmatmul.mubr.bf16.gmra.mxu0 %v375
    %v411 = vpop.f32.mrf.mxu0
    %v412 = vadd.f32 0.0, %v411
    %v413 = vpop.f32.mrf.mxu0
    %v414 = vpop.f32.mrf.mxu0
    %v415 = vadd.f32 0.0, %v414
    %v416 = vpop.f32.mrf.mxu0
    %417 = vdwg.mxu0
    %v422 = vunpack.c.l.b16 %v354
    %v423 = vunpack.c.l.b16 %v355
    %v424 = vunpack.c.l.b16 %v356
    %v425 = vunpack.c.l.b16 %v357
    %v426 = vpack.c.b16 %v423, %v422
    %v427 = vpack.c.b16 %v425, %v424
    %v431 = vsel %vm191, %v353, 0
    %433 = vmatprep.subr.bf16.mxu0 0
    %434 = vmatpush1.bf16.msra.mxu0 0
    %435 = vmatprep.subr.bf16.mxu0 0
    %436 = vmatpush1.bf16.msra.mxu0 0
    %437 = vmatprep.subr.bf16.mxu0 0
    %438 = vmatpush1.bf16.msra.mxu0 0
    %439 = vmatprep.subr.bf16.mxu0 0
    %440 = vmatpush1.bf16.msra.mxu0 0
    %441 = vmatprep.subr.bf16.mxu0 0
    %442 = vmatpush1.bf16.msra.mxu0 0
    %443 = vmatprep.subr.bf16.mxu0 0
    %444 = vmatpush1.bf16.msra.mxu0 0
    %445 = vmatprep.subr.bf16.mxu0 0
    %446 = vmatpush1.bf16.msra.mxu0 %v427
    %447 = vmatprep.subr.bf16.mxu0 0
    %448 = vmatpush1.bf16.msra.mxu0 %v426
    %449 = vmatprep.subr.bf16.mxu0 0
    %450 = vmatpush2.bf16.msra.mxu0 0
    %451 = vmatprep.subr.bf16.mxu0 0
    %452 = vmatpush2.bf16.msra.mxu0 0
    %453 = vmatprep.subr.bf16.mxu0 0
    %454 = vmatpush2.bf16.msra.mxu0 0
    %455 = vmatprep.subr.bf16.mxu0 0
    %456 = vmatpush2.bf16.msra.mxu0 0
    %457 = vmatprep.subr.bf16.mxu0 0
    %458 = vmatpush2.bf16.msra.mxu0 0
    %459 = vmatprep.subr.bf16.mxu0 0
    %460 = vmatpush2.bf16.msra.mxu0 0
    %461 = vmatprep.subr.bf16.mxu0 0
    %462 = vmatpush2.bf16.msra.mxu0 0
    %463 = vmatprep.subr.bf16.mxu0 0
    %464 = vmatpush2.bf16.msra.mxu0 0
    %465 = vmatprep.mubr.bf16.mxu0 0
    %466 = vmatmul.mubr.bf16.gmra.mxu0 %v431
    %v467 = vpop.f32.mrf.mxu0
    %v468 = vadd.f32 %v412, %v467
    %v469 = vpop.f32.mrf.mxu0
    %v470 = vpop.f32.mrf.mxu0
    %v471 = vadd.f32 %v415, %v470
    %v472 = vpop.f32.mrf.mxu0
    %473 = vdwg.mxu0
    %v474 = vld [vmem:[%s10] sm:$0x1]
    %v476 = vlaneseq
    %v477 = vshrl.u32 %v476, 7
    %v478 = vsub.s32 0, %v477
    %v479 = vrot.slane %v474, %v478
    %v481 = vadd.f32 %v468, %v479
    %v482 = vadd.f32 %v471, %v479
    %v483 = vld [vmem:[%s11] sm:$0x1]
    %v484 = vld [vmem:[%s12] sm:$0x1]
    %vm485 = vcmask 785408
    %v486 = vsel %vm485, %v481, 0.0
    %487 = vadd.xlane.f32.xlu0 %v486
    %v488 = vpop.xlane.xlu0 %487
    %v489 = vsel %vm485, %v482, 0.0
    %490 = vadd.xlane.f32.xlu0 %v489
    %v491 = vpop.xlane.xlu0 %490
    %v492 = vmul.f32 %v481, %v481
    %v493 = vmul.f32 %v482, %v482
    %v494 = vsel %vm485, %v492, 0.0
    %495 = vadd.xlane.f32.xlu0 %v494
    %v496 = vpop.xlane.xlu0 %495
    %v497 = vsel %vm485, %v493, 0.0
    %498 = vadd.xlane.f32.xlu0 %v497
    %v499 = vpop.xlane.xlu0 %498
    %v500 = vmul.f32 %v488, 0.010416667
    %v501 = vmul.f32 %v491, 0.010416667
    %v502 = vmul.f32 %v496, 0.010416667
    %v503 = vmul.f32 %v499, 0.010416667
    %v504 = vmul.f32 %v500, %v500
    %v505 = vmul.f32 %v501, %v501
    %v506 = vsub.f32 %v502, %v504
    %v507 = vsub.f32 %v503, %v505
    %v508 = vmax.f32 %v506, 0.0
    %v509 = vmax.f32 %v507, 0.0
    %v510 = vsub.f32 %v481, %v500
    %v511 = vsub.f32 %v482, %v501
    %v512 = vadd.f32 %v508, 1e-05
    %v513 = vadd.f32 %v509, 1e-05
    %v514 = vrsqrt.pop %v512
    %v515 = vrsqrt.pop %v513
    %v516 = vmul.f32 %v510, %v514
    %v517 = vmul.f32 %v511, %v515
    %v519 = vlaneseq
    %v520 = vshrl.u32 %v519, 7
    %v521 = vsub.s32 0, %v520
    %v522 = vrot.slane %v483, %v521
    %v524 = vmul.f32 %v516, %v522
    %v525 = vmul.f32 %v517, %v522
    %v527 = vlaneseq
    %v528 = vshrl.u32 %v527, 7
    %v529 = vsub.s32 0, %v528
    %v530 = vrot.slane %v484, %v529
    %v532 = vadd.f32 %v524, %v530
    %v533 = vadd.f32 %v525, %v530
    %v534 = vmax.f32 %v532, 0.0
    %v535 = vmax.f32 %v533, 0.0
    %536 = vst.msk [vmem:[#allocation17] sm:$0xff] %vm485, %v534
    %537 = vst.msk [vmem:[#allocation17 + $0x8] sm:$0xff] %vm485, %v535
    // Predicated region
    $region90: #{tpu_custom_call.1} parent=1 // pred_check
      _
    $region91: #{tpu_custom_call.1} parent=1 // pred_check_branch
      %539 = sbr.rel (0) target = $region93
    $region92: #{tpu_custom_call.1} parent=1 // pred_region
      %s541 = ssub.s32 256, 256
      %542 = vsyncadd [#allocation4], %s541
      %s543 = sshll.u32 [#allocation17], 4
      %s544 = int_to_ptr.vmem [resolvable:$true] %s543
      %549 = dma.vmem_to_hbm [thread:$0]  %s544, 256, %s13, [#allocation4], 128, 128, 8
    $region93: #{tpu_custom_call.1} parent=1 // pred_fallthru
      _
    // Predicated region
    $region94: #{tpu_custom_call.1} parent=1 // pred_check
      _
    $region95: #{tpu_custom_call.1} parent=1 // pred_check_branch
      %551 = sbr.rel (0) target = $region97
    $region96: #{tpu_custom_call.1} parent=1 // pred_region
      %552 = dma.done [#allocation4], 256
    $region97: #{tpu_custom_call.1} parent=1 // pred_fallthru
      _
    %553 = vsyncpa [#allocation3], 1
    %554 = vsyncpa [#allocation6], 1
    %555 = vsyncpa [#allocation9], 1
    %556 = vsyncpa [#allocation12], 1
    %557 = vsyncpa [#allocation15], 1
    %558 = vsyncpa [#allocation4], 1

</llo_original>
